<compile_context>
chip_gen: v6e
topology: v6e:2x2x1
jax: 0.10.0
libtpu: 0.0.40
codegen_flags: <defaults>
</compile_context>

<pallas_src>
import functools

import jax
import jax.numpy as jnp
from jax.experimental import pallas as pl
from jax.experimental.pallas import tpu as pltpu


# --------------------------------------------------------------------------- #
# Kernel
# --------------------------------------------------------------------------- #
def _combined_channel_loss_kernel(x_ref, part_ref, acc_ref, *, inv_b):
    """x_ref: (TB, TC, THW) input slab
    part_ref: (1, 1) SMEM scalar — per-(ci, hi)-block sum-of-squares of the mean
    acc_ref:  (TC, THW) f32 VMEM accumulator, resident across the batch axis."""
    bi = pl.program_id(2)

    @pl.when(bi == 0)
    def _():
        acc_ref[...] = jnp.zeros_like(acc_ref)

    # Batch-sum with on-the-fly widening to f32 (never materializes an f32
    # copy of the whole (TB, TC, THW) slab).
    acc_ref[...] += jnp.sum(x_ref[...].astype(jnp.float32), axis=0)

    @pl.when(bi == pl.num_programs(2) - 1)
    def _():
        m = acc_ref[...] * jnp.float32(inv_b)     # batch mean of this tile
        part_ref[0, 0] = jnp.sum(m * m)           # internal_f partial (sum of squares)


# --------------------------------------------------------------------------- #
# Tiling helpers
# --------------------------------------------------------------------------- #
def _vmem_budget():
    """Generation-aware (target_block_bytes, vmem_limit_bytes)."""
    try:
        cap = pltpu.get_tpu_info().vmem_capacity_bytes
    except Exception:  # pragma: no cover - conservative fallback
        cap = 128 * 1024 * 1024
    # Headroom under the physical ceiling: 64 MiB on v5e/v6e (128 MiB phys),
    # 48 MiB on v7x (64 MiB phys).
    vmem_limit = min(64 * 1024 * 1024, (cap * 3) // 4)
    # Input blocks are double-buffered and an f32 accumulator tile lives
    # alongside them; ~8 MiB blocks keep the total well inside the limit.
    target_bytes = min(8 * 1024 * 1024, vmem_limit // 6)
    return target_bytes, vmem_limit


def _divisors_desc(n, step):
    """Divisors of n that are multiples of `step`, descending.
    If n is not `step`-aligned, only the full extent is legal."""
    if n % step != 0:
        return [n]
    return [d for d in range(n, 0, -step) if n % d == 0]


def _pick_tiles(B, C, HW, itemsize, sub, target_bytes):
    """Pick (TB, TC, THW).  Preference (per perf review): full H*W rows
    (contiguous DMA slabs) > large channel tiles > large batch slabs, i.e.
    the batch axis is tiled before the spatial tiles shrink."""
    thw_opts = _divisors_desc(HW, 128)
    tc_opts = _divisors_desc(C, sub)
    tb_opts = [d for d in range(B, 0, -1) if B % d == 0]

    for thw in thw_opts:                    # prefer full rows first
        for tc in tc_opts:                  # then the largest channel tile
            for tb in tb_opts:              # then the largest batch slab
                if tb * tc * thw * itemsize <= target_bytes:
                    return tb, tc, thw
    return 1, tc_opts[-1], thw_opts[-1]     # minimal aligned tile always fits


def _split_for_megacore(tb, tc, thw, C, HW, itemsize, sub,
                        min_cells=4, min_block_bytes=1 << 20):
    """Ensure >= min_cells parallel grid cells (v7x has 2 TensorCores) as long
    as blocks stay >= ~1 MiB; otherwise splitting only adds step overhead."""
    def n_cells(tc_, thw_):
        return (C // tc_) * (HW // thw_)

    while (n_cells(tc, thw) < min_cells
           and tb * tc * thw * itemsize >= 2 * min_block_bytes):
        if tc % (2 * sub) == 0:             # halve channels first (keeps rows contiguous)
            tc //= 2
        elif thw % 256 == 0:                # else halve the row tile (stays 128-aligned)
            thw //= 2
        else:
            break
    return tc, thw


def _round_up(n, m):
    return ((n + m - 1) // m) * m


# --------------------------------------------------------------------------- #
# Wrapper
# --------------------------------------------------------------------------- #
def combined_channel_loss(x):
    """loss = internal_f(x.mean(0)) with internal_f(t) = (t**2).mean()."""
    B, C, H, W = x.shape
    HW = H * W
    itemsize = jnp.dtype(x.dtype).itemsize
    sub = max(8, 32 // itemsize)            # dtype-aware sublane granularity

    xf = x.reshape(B, C, HW)                # lane-dense layout: last axis is H*W

    # Zero-pad unaligned dims (only when larger than one granule) so tiles can
    # always be (sub, 128)-aligned and never exceed the VMEM budget.  Zeros
    # contribute 0 to the sum-of-squares; normalization uses the true C*HW.
    Cp = C if (C % sub == 0 or C < sub) else _round_up(C, sub)
    HWp = HW if (HW % 128 == 0 or HW < 128) else _round_up(HW, 128)
    if (Cp, HWp) != (C, HW):
        xf = jnp.pad(xf, ((0, 0), (0, Cp - C), (0, HWp - HW)))

    target_bytes, vmem_limit = _vmem_budget()
    TB, TC, THW = _pick_tiles(B, Cp, HWp, itemsize, sub, target_bytes)
    TC, THW = _split_for_megacore(TB, TC, THW, Cp, HWp, itemsize, sub)
    gc, ghw, gb = Cp // TC, HWp // THW, B // TB

    kernel = functools.partial(_combined_channel_loss_kernel, inv_b=1.0 / B)

    partials = pl.pallas_call(
        kernel,
        out_shape=jax.ShapeDtypeStruct((gc, ghw), jnp.float32),
        grid_spec=pltpu.PrefetchScalarGridSpec(
            num_scalar_prefetch=0,
            # Batch (reduction) axis innermost; spatial axes fully parallel.
            grid=(gc, ghw, gb),
            in_specs=[
                pl.BlockSpec((TB, TC, THW), lambda ci, hi, bi: (bi, ci, hi)),
            ],
            out_specs=pl.BlockSpec(
                (1, 1), lambda ci, hi, bi: (ci, hi),
                memory_space=pltpu.MemorySpace.SMEM,
            ),
            scratch_shapes=[pltpu.VMEM((TC, THW), jnp.float32)],
        ),
        compiler_params=pltpu.CompilerParams(
            dimension_semantics=("parallel", "parallel", "arbitrary"),
            vmem_limit_bytes=vmem_limit,
        ),
        cost_estimate=pl.CostEstimate(
            flops=(B + 2) * Cp * HWp,                       # adds + scale + squares
            transcendentals=0,
            bytes_accessed=B * Cp * HWp * itemsize + gc * ghw * 4,
        ),
    )(xf)

    # internal_f(x.mean(0)) = mean of squares, normalized by the TRUE C*H*W
    # (padded zeros contribute nothing to the partial sums).
    return jnp.sum(partials) / jnp.float32(C * HW)


if __name__ == "__main__":
    key = jax.random.PRNGKey(0)
    x = jax.random.normal(key, (2, 4, 16, 16), dtype=jnp.float32)

    loss = combined_channel_loss(x)
    jax.block_until_ready(loss)

    # Pure-JAX reference of the PyTorch forward with the chosen internal_f.
    internal_f = lambda t: jnp.mean(t * t)
    loss_ref = internal_f(jnp.mean(x, axis=0))

    assert jnp.allclose(loss, loss_ref, atol=1e-6, rtol=1e-5), (loss, loss_ref)

    print("KERNEL_OK")
</pallas_src>

<mosaic_0001>
module attributes {stable_mosaic.version = 11 : i64} {
  func.func @_combined_channel_loss_kernel(%arg0: i32, %arg1: i32, %arg2: i32, %arg3: memref<2x4x256xf32, #tpu.memory_space<vmem>>, %arg4: memref<1x1xf32, #tpu.memory_space<smem>>, %arg5: memref<4x256xf32, #tpu.memory_space<vmem>>) attributes {dimension_semantics = [#tpu.dimension_semantics<parallel>, #tpu.dimension_semantics<parallel>, #tpu.dimension_semantics<arbitrary>], iteration_bounds = array<i64: 1, 1, 1>, scalar_prefetch = 0 : i64, scratch_operands = 1 : i64, tpu.core_type = #tpu.core_type<tc>, window_params = [{transform_indices = @transform_0, window_bounds = array<i64: 2, 4, 256>}, {transform_indices = @transform_1, window_bounds = array<i64: 1, 1>}]} {
    %c0_i32 = arith.constant 0 : i32
    %0 = arith.cmpi eq, %arg2, %c0_i32 : i32
    %1 = arith.extui %0 : i1 to i32
    %c0_i32_0 = arith.constant 0 : i32
    %2 = arith.cmpi ne, %1, %c0_i32_0 : i32
    scf.if %2 {
      %cst_9 = arith.constant 0.000000e+00 : f32
      %11 = vector.broadcast %cst_9 : f32 to vector<4x256xf32>
      %c0_10 = arith.constant 0 : index
      %c0_11 = arith.constant 0 : index
      %12 = vector.load %arg5[%c0_10, %c0_11] : memref<4x256xf32, #tpu.memory_space<vmem>>, vector<4x256xf32>
      tpu.vector_store %arg5[%c0_10, %c0_11], %11 {strides = array<i32>} : memref<4x256xf32, #tpu.memory_space<vmem>>, vector<4x256xf32>,
    } else {
    }
    %c0 = arith.constant 0 : index
    %c0_1 = arith.constant 0 : index
    %3 = vector.load %arg5[%c0, %c0_1] : memref<4x256xf32, #tpu.memory_space<vmem>>, vector<4x256xf32>
    %c0_2 = arith.constant 0 : index
    %c0_3 = arith.constant 0 : index
    %c0_4 = arith.constant 0 : index
    %4 = vector.load %arg3[%c0_2, %c0_3, %c0_4] : memref<2x4x256xf32, #tpu.memory_space<vmem>>, vector<2x4x256xf32>
    %cst = arith.constant dense<0.000000e+00> : vector<4x256xf32>
    %5 = vector.multi_reduction <add>, %4, %cst [0] : vector<2x4x256xf32> to vector<4x256xf32>
    %6 = arith.addf %3, %5 : vector<4x256xf32>
    %c0_5 = arith.constant 0 : index
    %c0_6 = arith.constant 0 : index
    %7 = vector.load %arg5[%c0_5, %c0_6] : memref<4x256xf32, #tpu.memory_space<vmem>>, vector<4x256xf32>
    tpu.vector_store %arg5[%c0_5, %c0_6], %6 {strides = array<i32>} : memref<4x256xf32, #tpu.memory_space<vmem>>, vector<4x256xf32>,
    %c0_i32_7 = arith.constant 0 : i32
    %8 = arith.cmpi eq, %arg2, %c0_i32_7 : i32
    %9 = arith.extui %8 : i1 to i32
    %c0_i32_8 = arith.constant 0 : i32
    %10 = arith.cmpi ne, %9, %c0_i32_8 : i32
    scf.if %10 {
      %c0_9 = arith.constant 0 : index
      %c0_10 = arith.constant 0 : index
      %11 = vector.load %arg5[%c0_9, %c0_10] : memref<4x256xf32, #tpu.memory_space<vmem>>, vector<4x256xf32>
      %cst_11 = arith.constant 5.000000e-01 : f32
      %12 = vector.broadcast %cst_11 : f32 to vector<4x256xf32>
      %13 = arith.mulf %11, %12 : vector<4x256xf32>
      %14 = arith.mulf %13, %13 : vector<4x256xf32>
      %15 = vector.shape_cast %14 : vector<4x256xf32> to vector<1x4x256xf32>
      %cst_12 = arith.constant dense<0.000000e+00> : vector<1xf32>
      %16 = vector.multi_reduction <add>, %15, %cst_12 [1, 2] : vector<1x4x256xf32> to vector<1xf32>
      %17 = vector.shape_cast %16 : vector<1xf32> to vector<1x1x1xf32>
      %18 = vector.extract %17[0, 0, 0] : f32 from vector<1x1x1xf32>
      %c0_13 = arith.constant 0 : index
      %c0_14 = arith.constant 0 : index
      %19 = memref.load %arg4[%c0_13, %c0_14] : memref<1x1xf32, #tpu.memory_space<smem>>
      memref.store %18, %arg4[%c0_13, %c0_14] : memref<1x1xf32, #tpu.memory_space<smem>>
    } else {
    }
    return
  }
  func.func @transform_0(%arg0: i32, %arg1: i32, %arg2: i32) -> (i32, i32, i32) {
    %c0_i32 = arith.constant 0 : i32
    return %arg2, %arg0, %arg1 : i32, i32, i32
  }
  func.func @transform_1(%arg0: i32, %arg1: i32, %arg2: i32) -> (i32, i32) {
    %c0_i32 = arith.constant 0 : i32
    return %arg0, %arg1 : i32, i32
  }
}

</mosaic_0001>

<llo_original>
// kernel: tpu_custom_call.1
$region0: #{tpu_custom_call.1}
  #allocation0 [shape = 'u32[]', space=smem, size = 0x4, offset = 0x4, fixed_abs, tag = 'smem constant byte address 0x4 - core index']
  #allocation1 [shape = 'u32[144,128]{1,0:T(1,128)}', space=vmem, size = 0x12000, scoped, tag = 'internal scratch']
  #allocation2 [shape = 'f32[4,256]{1,0:T(4,128)}', space=vmem, size = 0x1000, scoped, tag = 'scratch operand']
  %s0 = inlined_call_operand.hbm [shape: f32[2,4,256], index: 0, kind: input, shape index: {}]
  %s1 = inlined_call_operand.hbm [shape: f32[1,1], index: 1, kind: output, shape index: {}]
  %s2 = sld [smem:[#allocation0]]
  $region26: #{tpu_custom_call.1} parent=0
    _
  %s4 = ssub.s32 1, %s2
  %s5 = scalar_select 0, %s4, %s2
  $region1: #{tpu_custom_call.1} parent=0
    #allocation3 [shape = 'u8[8192]{0}', space=vmem, size = 0x2000, scoped, tag = 'input window, operand 0, single buffered']
    #allocation4 [shape = 's32[1]{0}', space=sflag, size = 0x4, scoped, tag = 'scoped memory for tpu_custom_call.1']
    #allocation5 [shape = 's32[1]{0}', space=sflag, size = 0x4, scoped, tag = 'scoped memory for tpu_custom_call.1']
    #allocation6 [shape = 'u8[512]{0}', space=smem, size = 0x200, scoped, tag = 'output window, operand 0, single buffered']
    %6 = vsyncpa [#allocation4], 0
    %7 = vsyncpa [#allocation5], 0
    // Predicated region
    $region2: #{tpu_custom_call.1} parent=1 // pred_check
      _
    $region3: #{tpu_custom_call.1} parent=1 // pred_check_branch
      %9 = sbr.rel (0) target = $region5
    $region4: #{tpu_custom_call.1} parent=1 // pred_region
      %s11 = ssub.s32 256, 256
      %12 = vsyncadd [#allocation4], %s11
      %s13 = sshll.u32 [#allocation3], 4
      %s14 = int_to_ptr.vmem [resolvable:$true] %s13
      %19 = dma.hbm_to_vmem [thread:$0]  %s0, 256, %s14, [#allocation4], 128, 128, 8
    $region5: #{tpu_custom_call.1} parent=1 // pred_fallthru
      _
    // Predicated region
    $region6: #{tpu_custom_call.1} parent=1 // pred_check
      _
    $region7: #{tpu_custom_call.1} parent=1 // pred_check_branch
      %21 = sbr.rel (0) target = $region9
    $region8: #{tpu_custom_call.1} parent=1 // pred_region
      %22 = dma.done [#allocation4], 256
    $region9: #{tpu_custom_call.1} parent=1 // pred_fallthru
      _
    %p23 = scmp.eq.s32.totalorder 0, 0
    // Predicated region
    $region10: #{tpu_custom_call.1} parent=1 // pred_check
      %p24 = pneg %p23
    $region11: #{tpu_custom_call.1} parent=1 // pred_check_branch
      %26 = sbr.rel (%p24) target = $region13
    $region12: #{tpu_custom_call.1} parent=1 // pred_region
      %27 = vst [vmem:[#allocation2] sm:$0xff] 0.0
    $region13: #{tpu_custom_call.1} parent=1 // pred_fallthru
      _
    %v28 = vld [vmem:[#allocation2] sm:$0xff]
    %v29 = vld [vmem:[#allocation3] sm:$0xff]
    %v30 = vld [vmem:[#allocation3 + $0x8] sm:$0xff]
    %v33 = vcombine.high %v29, %v29
    %v34 = vcombine.high %v30, %v30
    %vm37 = vcmask 1043456
    %v38 = vsel %vm37, %v29, 0.0
    %v39 = vsel %vm37, %v30, 0.0
    %v40 = vadd.f32 %v38, %v39
    %v41 = vsel %vm37, %v33, 0.0
    %v42 = vsel %vm37, %v34, 0.0
    %v43 = vadd.f32 %v41, %v42
    %v46 = vcombine.low %v40, %v43
    %v48 = vadd.f32 %v28, %v46
    %49 = vst [vmem:[#allocation2] sm:$0xff] %v48
    // Predicated region
    $region14: #{tpu_custom_call.1} parent=1 // pred_check
      %p50 = pneg %p23
    $region15: #{tpu_custom_call.1} parent=1 // pred_check_branch
      %52 = sbr.rel (%p50) target = $region17
    $region16: #{tpu_custom_call.1} parent=1 // pred_region
      %v53 = vld [vmem:[#allocation2] sm:$0xff]
      %v54 = vmul.f32 %v53, 0.5
      %v55 = vmul.f32 %v54, %v54
      %v57 = vcombine.high %v55, %v55
      %v59 = vsel %vm37, %v55, 0.0
      %v60 = vsel %vm37, %v57, 0.0
      %v61 = vadd.f32 %v59, %v60
      %62 = vadd.xlane.f32.xlu0 %v61
      %v63 = vpop.xlane.xlu0 %62
      %v64 = vrot.slane %v63, 4
      %v65 = vadd.f32 %v63, %v64
      %v66 = vrot.slane %v65, 2
      %v67 = vadd.f32 %v65, %v66
      %v68 = vrot.slane %v67, 1
      %v69 = vadd.f32 %v67, %v68
      %s70 = vtos %v69
      %s71 = scalar_lea.smem [#allocation6], 0
      %72 = sst [smem:[%s71]] %s70
    $region17: #{tpu_custom_call.1} parent=1 // pred_fallthru
      _
    // Predicated region
    $region18: #{tpu_custom_call.1} parent=1 // pred_check
      _
    $region19: #{tpu_custom_call.1} parent=1 // pred_check_branch
      %74 = sbr.rel (0) target = $region21
    $region20: #{tpu_custom_call.1} parent=1 // pred_region
      %s76 = ssub.s32 16, 16
      %77 = vsyncadd [#allocation5], %s76
      %80 = dma.smem_to_hbm [#allocation6], 16, %s1, [#allocation5]
    $region21: #{tpu_custom_call.1} parent=1 // pred_fallthru
      _
    // Predicated region
    $region22: #{tpu_custom_call.1} parent=1 // pred_check
      _
    $region23: #{tpu_custom_call.1} parent=1 // pred_check_branch
      %82 = sbr.rel (0) target = $region25
    $region24: #{tpu_custom_call.1} parent=1 // pred_region
      %83 = dma.done [#allocation5], 16
    $region25: #{tpu_custom_call.1} parent=1 // pred_fallthru
      _
    %84 = sfence
    %85 = vsyncpa [#allocation4], 1
    %86 = vsyncpa [#allocation5], 1

</llo_original>
